<compile_context>
chip_gen: v7x
topology: tpu7x:2x2x1
jax: 0.10.0
libtpu: 0.0.40
codegen_flags: <defaults>
</compile_context>

<pallas_src>
import jax
import jax.numpy as jnp
from jax.experimental import pallas as pl
from jax.experimental.pallas import tpu as pltpu


def _make_kernel(M, L, neg_slope=0.01):
    """Fused (conv3x3 -> BN(eval) -> LeakyReLU) x 2 + residual, for NB batch rows (M=NB*H)."""

    def kernel(x_ref, wb_ref, scale_ref, shift_ref, mtop_ref, mbot_ref, out_ref):
        # x_ref:     (M, L)     activations, L = W*Cp lanes (lane-dense, Cp-padded channels)
        # wb_ref:    (3, L, L)  bf16 conv weight slabs for input rows h-1 / h / h+1
        # scale_ref: (1, L)     folded BN scale (per output lane)
        # shift_ref: (1, L)     folded BN shift (conv bias folded in)
        # mtop_ref:  (M, 1)     0 at per-sample row h==0   (zero-pad for the h-1 roll)
        # mbot_ref:  (M, 1)     0 at per-sample row h==H-1 (zero-pad for the h+1 roll)
        # out_ref:   (M, L)
        z0 = x_ref[...]                       # (M, L) f32
        wb0 = wb_ref[0]                       # (L, L) bf16  -- multiplies rows h-1
        wb1 = wb_ref[1]                       # (L, L) bf16  -- multiplies rows h
        wb2 = wb_ref[2]                       # (L, L) bf16  -- multiplies rows h+1
        scale = scale_ref[...]                # (1, L) f32
        shift = shift_ref[...]                # (1, L) f32
        mtop = mtop_ref[...]                  # (M, 1) f32
        mbot = mbot_ref[...]                  # (M, 1) f32

        def conv_bn_act(z):
            # Row shifts on the XLU (circular), then zero the per-sample boundary rows.
            zm = (pltpu.roll(z, shift=1, axis=0) * mtop).astype(jnp.bfloat16)      # z[h-1]
            zp = (pltpu.roll(z, shift=M - 1, axis=0) * mbot).astype(jnp.bfloat16)  # z[h+1]
            zc = z.astype(jnp.bfloat16)
            # Three MXU dots accumulated in f32 (no (M,3L) patches buffer).
            y = jnp.dot(zm, wb0, preferred_element_type=jnp.float32)
            y = y + jnp.dot(zc, wb1, preferred_element_type=jnp.float32)
            y = y + jnp.dot(zp, wb2, preferred_element_type=jnp.float32)
            y = y * scale + shift                                  # BN(eval) + conv bias
            return jnp.maximum(y, neg_slope * y)                   # LeakyReLU(0.01)

        y1 = conv_bn_act(z0)          # resLayer pass 1
        y2 = conv_bn_act(y1)          # resLayer pass 2 (same weights)
        out_ref[...] = z0 + y2        # residual add, full aligned lane-dense block

    return kernel


def residual_connection_pallas(x_nchw, w_oihw, conv_bias, gamma, beta,
                               running_mean, running_var, eps=1e-5,
                               neg_slope=0.01, rows_target=256):
    N, C, H, W = x_nchw.shape
    assert w_oihw.shape == (C, C, 3, 3)

    Cp = -(-C // 8) * 8              # channels padded to 8 -> lanes = W*Cp (= 128 here)
    L = W * Cp
    pad_c = Cp - C

    # Fold batch into the matmul M dimension (target ~256 rows for v6e/v7x MXU).
    NB = max(1, min(N, rows_target // H))
    Npad = -(-N // NB) * NB
    M = NB * H

    # ---- host-side preprocessing (jnp only, traceable) -----------------------
    # Fold BN (eval) + conv bias into a per-channel affine, laid out per lane.
    scale = (gamma / jnp.sqrt(running_var + eps)).astype(jnp.float32)
    shift = ((conv_bias - running_mean) * scale + beta).astype(jnp.float32)
    scale_lane = jnp.tile(jnp.pad(scale, (0, pad_c)), (W,)).reshape(1, L)
    shift_lane = jnp.tile(jnp.pad(shift, (0, pad_c)), (W,)).reshape(1, L)

    # im2col weight slabs: wb[kh, wp*Cp+ci, w*Cp+co] = w[co, ci, kh, kw] with kw = wp-w+1,
    # zero wherever the kw tap falls outside [0, W) (the conv's zero padding along W).
    w_t = jnp.transpose(w_oihw.astype(jnp.float32), (2, 3, 1, 0))         # (kh, kw, ci, co)
    w_t = jnp.pad(w_t, ((0, 0), (0, 0), (0, pad_c), (0, pad_c)))          # (3, 3, Cp, Cp)
    kwi = jnp.arange(3)[:, None, None]
    wpi = jnp.arange(W)[None, :, None]
    wi = jnp.arange(W)[None, None, :]
    sel = (wpi == wi + kwi - 1).astype(jnp.float32)                       # (kw, wp, w)
    wb = jnp.einsum('kvw,hkic->hviwc', sel, w_t)                          # (3, W, Cp, W, Cp)
    wb = wb.reshape(3, L, L).astype(jnp.bfloat16)                         # bf16 MXU operands

    # Per-sample boundary masks for the circular rolls (same pattern for every block).
    r = jnp.arange(M) % H
    mask_top = (r != 0).astype(jnp.float32).reshape(M, 1)
    mask_bot = (r != H - 1).astype(jnp.float32).reshape(M, 1)

    # NCHW -> (Npad*H, W*Cp): channels innermost on lanes, zero-padded to Cp; batch padded
    # to a multiple of NB (extra rows computed and discarded).
    x = jnp.transpose(x_nchw.astype(jnp.float32), (0, 2, 3, 1))           # NHWC
    x = jnp.pad(x, ((0, Npad - N), (0, 0), (0, 0), (0, pad_c)))
    x = x.reshape(Npad * H, L)

    kernel = _make_kernel(M, L, neg_slope)

    out = pl.pallas_call(
        kernel,
        out_shape=jax.ShapeDtypeStruct((Npad * H, L), jnp.float32),
        grid_spec=pltpu.PrefetchScalarGridSpec(
            num_scalar_prefetch=0,
            grid=(Npad // NB,),   # "parallel": v7x shards batch blocks across its 2 TCs
            in_specs=[
                pl.BlockSpec((M, L), lambda n: (n, 0)),
                pl.BlockSpec((3, L, L), lambda n: (0, 0, 0)),
                pl.BlockSpec((1, L), lambda n: (0, 0)),
                pl.BlockSpec((1, L), lambda n: (0, 0)),
                pl.BlockSpec((M, 1), lambda n: (0, 0)),
                pl.BlockSpec((M, 1), lambda n: (0, 0)),
            ],
            out_specs=pl.BlockSpec((M, L), lambda n: (n, 0)),
        ),
        input_output_aliases={0: 0},   # x slab fully read before the residual writeback
        compiler_params=pltpu.CompilerParams(
            dimension_semantics=("parallel",),
            vmem_limit_bytes=32 * 1024 * 1024,   # explicit (v5e default is only 16 MiB)
        ),
    )(x, wb, scale_lane, shift_lane, mask_top, mask_bot)

    # (Npad*H, W*Cp) -> NCHW, dropping batch/channel padding.
    out = out[: N * H].reshape(N, H, W, Cp)[..., :C]
    return jnp.transpose(out, (0, 3, 1, 2))


def residual_connection_ref(x_nchw, w_oihw, conv_bias, gamma, beta,
                            running_mean, running_var, eps=1e-5, neg_slope=0.01):
    """Pure-JAX NCHW reference mirroring the PyTorch forward in eval mode."""

    def bc(v):
        return v[None, :, None, None]

    def res_layer(z):
        y = jax.lax.conv_general_dilated(
            z, w_oihw, window_strides=(1, 1), padding=((1, 1), (1, 1)),
            dimension_numbers=("NCHW", "OIHW", "NCHW"))
        y = y + bc(conv_bias)
        y = (bc(gamma) * (y - bc(running_mean))
             / jnp.sqrt(bc(running_var) + eps) + bc(beta))
        return jnp.where(y >= 0, y, neg_slope * y)

    return x_nchw + res_layer(res_layer(x_nchw))


if __name__ == "__main__":
    # Small shapes consistent with the module: batch=2, channels=4, spatial=16.
    N, C, H, W = 2, 4, 16, 16
    key = jax.random.PRNGKey(0)
    kx, kw, kb, kg, kbeta, km, kv = jax.random.split(key, 7)

    x = jax.random.normal(kx, (N, C, H, W), dtype=jnp.float32)          # PyTorch NCHW
    w = 0.1 * jax.random.normal(kw, (C, C, 3, 3), dtype=jnp.float32)    # OIHW conv weight
    conv_bias = 0.1 * jax.random.normal(kb, (C,), dtype=jnp.float32)
    gamma = 1.0 + 0.1 * jax.random.normal(kg, (C,), dtype=jnp.float32)
    beta = 0.1 * jax.random.normal(kbeta, (C,), dtype=jnp.float32)
    running_mean = 0.1 * jax.random.normal(km, (C,), dtype=jnp.float32)
    running_var = 0.5 + jnp.abs(jax.random.normal(kv, (C,), dtype=jnp.float32))

    out = residual_connection_pallas(x, w, conv_bias, gamma, beta,
                                     running_mean, running_var)
    out = jax.block_until_ready(out)

    ref = residual_connection_ref(x, w, conv_bias, gamma, beta,
                                  running_mean, running_var)
    assert out.shape == (N, C, H, W)
    max_err = jnp.max(jnp.abs(out - ref))
    # Tolerance reflects bf16 MXU operands (per perf review) with f32 accumulation;
    # the f32 reference differs by bf16 operand rounding across the two chained convs.
    assert jnp.allclose(out, ref, rtol=2e-2, atol=2e-2), f"max abs err = {max_err}"

    print("KERNEL_OK")
</pallas_src>

<mosaic_0001>
module attributes {stable_mosaic.version = 11 : i64} {
  func.func @kernel(%arg0: i32, %arg1: memref<32x128xf32, #tpu.memory_space<vmem>>, %arg2: memref<3x128x128xbf16, #tpu.memory_space<vmem>>, %arg3: memref<1x128xf32, #tpu.memory_space<vmem>>, %arg4: memref<1x128xf32, #tpu.memory_space<vmem>>, %arg5: memref<32x1xf32, #tpu.memory_space<vmem>>, %arg6: memref<32x1xf32, #tpu.memory_space<vmem>>, %arg7: memref<32x128xf32, #tpu.memory_space<vmem>>) attributes {dimension_semantics = [#tpu.dimension_semantics<parallel>], iteration_bounds = array<i64: 1>, scalar_prefetch = 0 : i64, scratch_operands = 0 : i64, tpu.core_type = #tpu.core_type<tc>, window_params = [{transform_indices = @transform_0, window_bounds = array<i64: 32, 128>}, {pipeline_mode = #tpu.pipeline_mode<synchronous>, transform_indices = @transform_1, window_bounds = array<i64: 3, 128, 128>}, {pipeline_mode = #tpu.pipeline_mode<synchronous>, transform_indices = @transform_2, window_bounds = array<i64: 1, 128>}, {pipeline_mode = #tpu.pipeline_mode<synchronous>, transform_indices = @transform_3, window_bounds = array<i64: 1, 128>}, {pipeline_mode = #tpu.pipeline_mode<synchronous>, transform_indices = @transform_4, window_bounds = array<i64: 32, 1>}, {pipeline_mode = #tpu.pipeline_mode<synchronous>, transform_indices = @transform_5, window_bounds = array<i64: 32, 1>}, {transform_indices = @transform_6, window_bounds = array<i64: 32, 128>}]} {
    %c0 = arith.constant 0 : index
    %c0_0 = arith.constant 0 : index
    %0 = vector.load %arg1[%c0, %c0_0] : memref<32x128xf32, #tpu.memory_space<vmem>>, vector<32x128xf32>
    %c0_1 = arith.constant 0 : index
    %c0_2 = arith.constant 0 : index
    %c0_3 = arith.constant 0 : index
    %1 = vector.load %arg2[%c0_1, %c0_2, %c0_3] : memref<3x128x128xbf16, #tpu.memory_space<vmem>>, vector<1x128x128xbf16>
    %2 = vector.shape_cast %1 : vector<1x128x128xbf16> to vector<128x128xbf16>
    %c1 = arith.constant 1 : index
    %c0_4 = arith.constant 0 : index
    %c0_5 = arith.constant 0 : index
    %3 = vector.load %arg2[%c1, %c0_4, %c0_5] : memref<3x128x128xbf16, #tpu.memory_space<vmem>>, vector<1x128x128xbf16>
    %4 = vector.shape_cast %3 : vector<1x128x128xbf16> to vector<128x128xbf16>
    %c2 = arith.constant 2 : index
    %c0_6 = arith.constant 0 : index
    %c0_7 = arith.constant 0 : index
    %5 = vector.load %arg2[%c2, %c0_6, %c0_7] : memref<3x128x128xbf16, #tpu.memory_space<vmem>>, vector<1x128x128xbf16>
    %6 = vector.shape_cast %5 : vector<1x128x128xbf16> to vector<128x128xbf16>
    %c0_8 = arith.constant 0 : index
    %c0_9 = arith.constant 0 : index
    %7 = vector.load %arg3[%c0_8, %c0_9] : memref<1x128xf32, #tpu.memory_space<vmem>>, vector<1x128xf32>
    %c0_10 = arith.constant 0 : index
    %c0_11 = arith.constant 0 : index
    %8 = vector.load %arg4[%c0_10, %c0_11] : memref<1x128xf32, #tpu.memory_space<vmem>>, vector<1x128xf32>
    %c0_12 = arith.constant 0 : index
    %c0_13 = arith.constant 0 : index
    %9 = vector.load %arg5[%c0_12, %c0_13] : memref<32x1xf32, #tpu.memory_space<vmem>>, vector<32x1xf32>
    %c0_14 = arith.constant 0 : index
    %c0_15 = arith.constant 0 : index
    %10 = vector.load %arg6[%c0_14, %c0_15] : memref<32x1xf32, #tpu.memory_space<vmem>>, vector<32x1xf32>
    %c1_i32 = arith.constant 1 : i32
    %11 = tpu.dynamic_rotate %0 by %c1_i32 dim 0 : vector<32x128xf32>, i32 -> vector<32x128xf32>
    %12 = vector.broadcast %9 : vector<32x1xf32> to vector<32x128xf32>
    %13 = arith.mulf %11, %12 : vector<32x128xf32>
    %14 = arith.truncf %13 : vector<32x128xf32> to vector<32x128xbf16>
    %c31_i32 = arith.constant 31 : i32
    %15 = tpu.dynamic_rotate %0 by %c31_i32 dim 0 : vector<32x128xf32>, i32 -> vector<32x128xf32>
    %16 = vector.broadcast %10 : vector<32x1xf32> to vector<32x128xf32>
    %17 = arith.mulf %15, %16 : vector<32x128xf32>
    %18 = arith.truncf %17 : vector<32x128xf32> to vector<32x128xbf16>
    %19 = arith.truncf %0 : vector<32x128xf32> to vector<32x128xbf16>
    %cst = arith.constant dense<0.000000e+00> : vector<32x128xf32>
    %20 = tpu.matmul %14, %2, %cst {dimension_numbers = #tpu.dot_dimension_numbers<[1], [0], [0], [1], [0, 0, 1, 1], [], []>} : vector<32x128xbf16>, vector<128x128xbf16>, vector<32x128xf32> -> vector<32x128xf32>
    %cst_16 = arith.constant dense<0.000000e+00> : vector<32x128xf32>
    %21 = tpu.matmul %19, %4, %cst_16 {dimension_numbers = #tpu.dot_dimension_numbers<[1], [0], [0], [1], [0, 0, 1, 1], [], []>} : vector<32x128xbf16>, vector<128x128xbf16>, vector<32x128xf32> -> vector<32x128xf32>
    %22 = arith.addf %20, %21 : vector<32x128xf32>
    %cst_17 = arith.constant dense<0.000000e+00> : vector<32x128xf32>
    %23 = tpu.matmul %18, %6, %cst_17 {dimension_numbers = #tpu.dot_dimension_numbers<[1], [0], [0], [1], [0, 0, 1, 1], [], []>} : vector<32x128xbf16>, vector<128x128xbf16>, vector<32x128xf32> -> vector<32x128xf32>
    %24 = arith.addf %22, %23 : vector<32x128xf32>
    %25 = vector.broadcast %7 : vector<1x128xf32> to vector<32x128xf32>
    %26 = arith.mulf %24, %25 : vector<32x128xf32>
    %27 = vector.broadcast %8 : vector<1x128xf32> to vector<32x128xf32>
    %28 = arith.addf %26, %27 : vector<32x128xf32>
    %cst_18 = arith.constant 0.00999999977 : f32
    %29 = vector.broadcast %cst_18 : f32 to vector<32x128xf32>
    %30 = arith.mulf %29, %28 : vector<32x128xf32>
    %31 = arith.maximumf %28, %30 : vector<32x128xf32>
    %c1_i32_19 = arith.constant 1 : i32
    %32 = tpu.dynamic_rotate %31 by %c1_i32_19 dim 0 : vector<32x128xf32>, i32 -> vector<32x128xf32>
    %33 = vector.broadcast %9 : vector<32x1xf32> to vector<32x128xf32>
    %34 = arith.mulf %32, %33 : vector<32x128xf32>
    %35 = arith.truncf %34 : vector<32x128xf32> to vector<32x128xbf16>
    %c31_i32_20 = arith.constant 31 : i32
    %36 = tpu.dynamic_rotate %31 by %c31_i32_20 dim 0 : vector<32x128xf32>, i32 -> vector<32x128xf32>
    %37 = vector.broadcast %10 : vector<32x1xf32> to vector<32x128xf32>
    %38 = arith.mulf %36, %37 : vector<32x128xf32>
    %39 = arith.truncf %38 : vector<32x128xf32> to vector<32x128xbf16>
    %40 = arith.truncf %31 : vector<32x128xf32> to vector<32x128xbf16>
    %cst_21 = arith.constant dense<0.000000e+00> : vector<32x128xf32>
    %41 = tpu.matmul %35, %2, %cst_21 {dimension_numbers = #tpu.dot_dimension_numbers<[1], [0], [0], [1], [0, 0, 1, 1], [], []>} : vector<32x128xbf16>, vector<128x128xbf16>, vector<32x128xf32> -> vector<32x128xf32>
    %cst_22 = arith.constant dense<0.000000e+00> : vector<32x128xf32>
    %42 = tpu.matmul %40, %4, %cst_22 {dimension_numbers = #tpu.dot_dimension_numbers<[1], [0], [0], [1], [0, 0, 1, 1], [], []>} : vector<32x128xbf16>, vector<128x128xbf16>, vector<32x128xf32> -> vector<32x128xf32>
    %43 = arith.addf %41, %42 : vector<32x128xf32>
    %cst_23 = arith.constant dense<0.000000e+00> : vector<32x128xf32>
    %44 = tpu.matmul %39, %6, %cst_23 {dimension_numbers = #tpu.dot_dimension_numbers<[1], [0], [0], [1], [0, 0, 1, 1], [], []>} : vector<32x128xbf16>, vector<128x128xbf16>, vector<32x128xf32> -> vector<32x128xf32>
    %45 = arith.addf %43, %44 : vector<32x128xf32>
    %46 = vector.broadcast %7 : vector<1x128xf32> to vector<32x128xf32>
    %47 = arith.mulf %45, %46 : vector<32x128xf32>
    %48 = vector.broadcast %8 : vector<1x128xf32> to vector<32x128xf32>
    %49 = arith.addf %47, %48 : vector<32x128xf32>
    %cst_24 = arith.constant 0.00999999977 : f32
    %50 = vector.broadcast %cst_24 : f32 to vector<32x128xf32>
    %51 = arith.mulf %50, %49 : vector<32x128xf32>
    %52 = arith.maximumf %49, %51 : vector<32x128xf32>
    %53 = arith.addf %0, %52 : vector<32x128xf32>
    %c0_25 = arith.constant 0 : index
    %c0_26 = arith.constant 0 : index
    %54 = vector.load %arg7[%c0_25, %c0_26] : memref<32x128xf32, #tpu.memory_space<vmem>>, vector<32x128xf32>
    tpu.vector_store %arg7[%c0_25, %c0_26], %53 {strides = array<i32>} : memref<32x128xf32, #tpu.memory_space<vmem>>, vector<32x128xf32>,
    return
  }
  func.func @transform_0(%arg0: i32) -> (i32, i32) {
    %c0_i32 = arith.constant 0 : i32
    %c0_i32_0 = arith.constant 0 : i32
    return %arg0, %c0_i32 : i32, i32
  }
  func.func @transform_1(%arg0: i32) -> (i32, i32, i32) {
    %c0_i32 = arith.constant 0 : i32
    %c0_i32_0 = arith.constant 0 : i32
    %c0_i32_1 = arith.constant 0 : i32
    %c0_i32_2 = arith.constant 0 : i32
    return %c0_i32, %c0_i32_0, %c0_i32_1 : i32, i32, i32
  }
  func.func @transform_2(%arg0: i32) -> (i32, i32) {
    %c0_i32 = arith.constant 0 : i32
    %c0_i32_0 = arith.constant 0 : i32
    %c0_i32_1 = arith.constant 0 : i32
    return %c0_i32, %c0_i32_0 : i32, i32
  }
  func.func @transform_3(%arg0: i32) -> (i32, i32) {
    %c0_i32 = arith.constant 0 : i32
    %c0_i32_0 = arith.constant 0 : i32
    %c0_i32_1 = arith.constant 0 : i32
    return %c0_i32, %c0_i32_0 : i32, i32
  }
  func.func @transform_4(%arg0: i32) -> (i32, i32) {
    %c0_i32 = arith.constant 0 : i32
    %c0_i32_0 = arith.constant 0 : i32
    %c0_i32_1 = arith.constant 0 : i32
    return %c0_i32, %c0_i32_0 : i32, i32
  }
  func.func @transform_5(%arg0: i32) -> (i32, i32) {
    %c0_i32 = arith.constant 0 : i32
    %c0_i32_0 = arith.constant 0 : i32
    %c0_i32_1 = arith.constant 0 : i32
    return %c0_i32, %c0_i32_0 : i32, i32
  }
  func.func @transform_6(%arg0: i32) -> (i32, i32) {
    %c0_i32 = arith.constant 0 : i32
    %c0_i32_0 = arith.constant 0 : i32
    return %arg0, %c0_i32 : i32, i32
  }
}

</mosaic_0001>

<llo_original>
// kernel: tpu_custom_call.1
$region0: #{tpu_custom_call.1}
  #allocation0 [shape = 'u32[]', space=smem, size = 0x4, offset = 0x4, fixed_abs, tag = 'smem constant byte address 0x4 - core index']
  #allocation1 [shape = 'u32[144,128]{1,0:T(1,128)}', space=vmem, size = 0x12000, scoped, tag = 'internal scratch']
  %s0 = inlined_call_operand.hbm [shape: f32[32,128], index: 0, kind: input, shape index: {}, may-alias: {0,6}]
  %s1 = inlined_call_operand.hbm [shape: bf16[3,128,128], index: 1, kind: input, shape index: {}]
  %s2 = inlined_call_operand.vmem [shape: f32[1,128], index: 2, kind: input, shape index: {}]
  %s3 = inlined_call_operand.vmem [shape: f32[1,128], index: 3, kind: input, shape index: {}]
  %s4 = inlined_call_operand.vmem [shape: f32[32,1], index: 4, kind: input, shape index: {}]
  %s5 = inlined_call_operand.vmem [shape: f32[32,1], index: 5, kind: input, shape index: {}]
  %s6 = inlined_call_operand.hbm [shape: f32[32,128], index: 6, kind: output, shape index: {}, may-alias: {0,6}]
  %s7 = sld [smem:[#allocation0]]
  $region42: #{tpu_custom_call.1} parent=0
    _
  %s9 = ssub.s32 1, %s7
  %s10 = scalar_select 0, %s9, %s7
  $region1: #{tpu_custom_call.1} parent=0
    #allocation2 [shape = 'u8[16384]{0}', space=vmem, size = 0x4000, scoped, tag = 'input window, operand 0, single buffered']
    #allocation3 [shape = 's32[1]{0}', space=sflag, size = 0x4, scoped, tag = 'scoped memory for tpu_custom_call.1']
    #allocation4 [shape = 's32[1]{0}', space=sflag, size = 0x4, scoped, tag = 'scoped memory for tpu_custom_call.1']
    #allocation5 [shape = 'u8[98304]{0}', space=vmem, size = 0x18000, scoped, tag = 'input window, operand 1, single buffered']
    #allocation6 [shape = 's32[1]{0}', space=sflag, size = 0x4, scoped, tag = 'scoped memory for tpu_custom_call.1']
    #allocation7 [shape = 'u8[16384]{0}', space=vmem, size = 0x4000, scoped, tag = 'output window, operand 0, single buffered']
    %11 = vsyncpa [#allocation3], 0
    %12 = vsyncpa [#allocation6], 0
    %13 = vsyncpa [#allocation4], 0
    // Predicated region
    $region2: #{tpu_custom_call.1} parent=1 // pred_check
      _
    $region3: #{tpu_custom_call.1} parent=1 // pred_check_branch
      %15 = sbr.rel (0) target = $region5
    $region4: #{tpu_custom_call.1} parent=1 // pred_region
      %s17 = ssub.s32 512, 512
      %18 = vsyncadd [#allocation3], %s17
      %s19 = sshll.u32 [#allocation2], 4
      %s20 = int_to_ptr.vmem [resolvable:$true] %s19
      %25 = dma.hbm_to_vmem [thread:$0]  %s0, 512, %s20, [#allocation3], 128, 128, 8
    $region5: #{tpu_custom_call.1} parent=1 // pred_fallthru
      _
    // Predicated region
    $region6: #{tpu_custom_call.1} parent=1 // pred_check
      _
    $region7: #{tpu_custom_call.1} parent=1 // pred_check_branch
      %27 = sbr.rel (0) target = $region9
    $region8: #{tpu_custom_call.1} parent=1 // pred_region
      %s29 = ssub.s32 3072, 3072
      %30 = vsyncadd [#allocation6], %s29
      %s31 = sshll.u32 [#allocation5], 4
      %s32 = int_to_ptr.vmem [resolvable:$true] %s31
      %37 = dma.hbm_to_vmem [thread:$0]  %s1, 3072, %s32, [#allocation6], 64, 64, 4
    $region9: #{tpu_custom_call.1} parent=1 // pred_fallthru
      _
    // Predicated region
    $region10: #{tpu_custom_call.1} parent=1 // pred_check
      _
    $region11: #{tpu_custom_call.1} parent=1 // pred_check_branch
      %39 = sbr.rel (0) target = $region13
    $region12: #{tpu_custom_call.1} parent=1 // pred_region
      _
    $region13: #{tpu_custom_call.1} parent=1 // pred_fallthru
      _
    // Predicated region
    $region14: #{tpu_custom_call.1} parent=1 // pred_check
      _
    $region15: #{tpu_custom_call.1} parent=1 // pred_check_branch
      %41 = sbr.rel (0) target = $region17
    $region16: #{tpu_custom_call.1} parent=1 // pred_region
      _
    $region17: #{tpu_custom_call.1} parent=1 // pred_fallthru
      _
    // Predicated region
    $region18: #{tpu_custom_call.1} parent=1 // pred_check
      _
    $region19: #{tpu_custom_call.1} parent=1 // pred_check_branch
      %43 = sbr.rel (0) target = $region21
    $region20: #{tpu_custom_call.1} parent=1 // pred_region
      _
    $region21: #{tpu_custom_call.1} parent=1 // pred_fallthru
      _
    // Predicated region
    $region22: #{tpu_custom_call.1} parent=1 // pred_check
      _
    $region23: #{tpu_custom_call.1} parent=1 // pred_check_branch
      %45 = sbr.rel (0) target = $region25
    $region24: #{tpu_custom_call.1} parent=1 // pred_region
      _
    $region25: #{tpu_custom_call.1} parent=1 // pred_fallthru
      _
    // Predicated region
    $region26: #{tpu_custom_call.1} parent=1 // pred_check
      _
    $region27: #{tpu_custom_call.1} parent=1 // pred_check_branch
      %47 = sbr.rel (0) target = $region29
    $region28: #{tpu_custom_call.1} parent=1 // pred_region
      %48 = dma.done [#allocation3], 512
    $region29: #{tpu_custom_call.1} parent=1 // pred_fallthru
      _
    // Predicated region
    $region30: #{tpu_custom_call.1} parent=1 // pred_check
      _
    $region31: #{tpu_custom_call.1} parent=1 // pred_check_branch
      %50 = sbr.rel (0) target = $region33
    $region32: #{tpu_custom_call.1} parent=1 // pred_region
      %51 = dma.done [#allocation6], 3072
    $region33: #{tpu_custom_call.1} parent=1 // pred_fallthru
      _
    %v53 = vld [vmem:[#allocation2] sm:$0xff]
    %v54 = vld [vmem:[#allocation2 + $0x8] sm:$0xff]
    %v55 = vld [vmem:[#allocation2 + $0x10] sm:$0xff]
    %v56 = vld [vmem:[#allocation2 + $0x18] sm:$0xff]
    %v57 = vld [vmem:[#allocation5] sm:$0xf]
    %v58 = vld [vmem:[#allocation5 + $0x4] sm:$0xf]
    %v59 = vld [vmem:[#allocation5 + $0x8] sm:$0xf]
    %v60 = vld [vmem:[#allocation5 + $0xc] sm:$0xf]
    %v61 = vld [vmem:[#allocation5 + $0x10] sm:$0xf]
    %v62 = vld [vmem:[#allocation5 + $0x14] sm:$0xf]
    %v63 = vld [vmem:[#allocation5 + $0x18] sm:$0xf]
    %v64 = vld [vmem:[#allocation5 + $0x1c] sm:$0xf]
    %v65 = vld [vmem:[#allocation5 + $0x20] sm:$0xf]
    %v66 = vld [vmem:[#allocation5 + $0x24] sm:$0xf]
    %v67 = vld [vmem:[#allocation5 + $0x28] sm:$0xf]
    %v68 = vld [vmem:[#allocation5 + $0x2c] sm:$0xf]
    %v69 = vld [vmem:[#allocation5 + $0x30] sm:$0xf]
    %v70 = vld [vmem:[#allocation5 + $0x34] sm:$0xf]
    %v71 = vld [vmem:[#allocation5 + $0x38] sm:$0xf]
    %v72 = vld [vmem:[#allocation5 + $0x3c] sm:$0xf]
    %s73 = scalar_lea.vmem [#allocation5], 64
    %v74 = vld [vmem:[%s73] sm:$0xf]
    %v75 = vld [vmem:[%s73 + $0x4] sm:$0xf]
    %v76 = vld [vmem:[%s73 + $0x8] sm:$0xf]
    %v77 = vld [vmem:[%s73 + $0xc] sm:$0xf]
    %v78 = vld [vmem:[%s73 + $0x10] sm:$0xf]
    %v79 = vld [vmem:[%s73 + $0x14] sm:$0xf]
    %v80 = vld [vmem:[%s73 + $0x18] sm:$0xf]
    %v81 = vld [vmem:[%s73 + $0x1c] sm:$0xf]
    %v82 = vld [vmem:[%s73 + $0x20] sm:$0xf]
    %v83 = vld [vmem:[%s73 + $0x24] sm:$0xf]
    %v84 = vld [vmem:[%s73 + $0x28] sm:$0xf]
    %v85 = vld [vmem:[%s73 + $0x2c] sm:$0xf]
    %v86 = vld [vmem:[%s73 + $0x30] sm:$0xf]
    %v87 = vld [vmem:[%s73 + $0x34] sm:$0xf]
    %v88 = vld [vmem:[%s73 + $0x38] sm:$0xf]
    %v89 = vld [vmem:[%s73 + $0x3c] sm:$0xf]
    %s90 = scalar_lea.vmem [#allocation5], 128
    %v91 = vld [vmem:[%s90] sm:$0xf]
    %v92 = vld [vmem:[%s90 + $0x4] sm:$0xf]
    %v93 = vld [vmem:[%s90 + $0x8] sm:$0xf]
    %v94 = vld [vmem:[%s90 + $0xc] sm:$0xf]
    %v95 = vld [vmem:[%s90 + $0x10] sm:$0xf]
    %v96 = vld [vmem:[%s90 + $0x14] sm:$0xf]
    %v97 = vld [vmem:[%s90 + $0x18] sm:$0xf]
    %v98 = vld [vmem:[%s90 + $0x1c] sm:$0xf]
    %v99 = vld [vmem:[%s90 + $0x20] sm:$0xf]
    %v100 = vld [vmem:[%s90 + $0x24] sm:$0xf]
    %v101 = vld [vmem:[%s90 + $0x28] sm:$0xf]
    %v102 = vld [vmem:[%s90 + $0x2c] sm:$0xf]
    %v103 = vld [vmem:[%s90 + $0x30] sm:$0xf]
    %v104 = vld [vmem:[%s90 + $0x34] sm:$0xf]
    %v105 = vld [vmem:[%s90 + $0x38] sm:$0xf]
    %v106 = vld [vmem:[%s90 + $0x3c] sm:$0xf]
    %v107 = vld [vmem:[%s2] sm:$0x1]
    %v108 = vld [vmem:[%s3] sm:$0x1]
    %v109 = vld [vmem:[%s4] sm:$0xff]
    %v110 = vld [vmem:[%s4 + $0x8] sm:$0xff]
    %v111 = vld [vmem:[%s4 + $0x10] sm:$0xff]
    %v112 = vld [vmem:[%s4 + $0x18] sm:$0xff]
    %v113 = vld [vmem:[%s5] sm:$0xff]
    %v114 = vld [vmem:[%s5 + $0x8] sm:$0xff]
    %v115 = vld [vmem:[%s5 + $0x10] sm:$0xff]
    %v116 = vld [vmem:[%s5 + $0x18] sm:$0xff]
    %v117 = vrot.slane %v53, 7
    %v118 = vrot.slane %v54, 7
    %v119 = vrot.slane %v55, 7
    %v120 = vrot.slane %v56, 7
    %v121 = vlaneseq
    %v122 = vshrl.u32 %v121, 7
    %vm123 = vcmp.lt.s32.totalorder %v122, 1
    %v124 = vsel %vm123, %v119, %v120
    %v125 = vsel %vm123, %v118, %v119
    %v126 = vsel %vm123, %v117, %v118
    %v127 = vsel %vm123, %v120, %v117
    %129 = vset.pattern.permute.xlu0 0
    %130 = vperm.xlu0 %129, %v109
    %v131 = vpop.permute.xlu0 %130
    %134 = vset.pattern.permute.xlu0 0
    %135 = vperm.xlu0 %134, %v110
    %v136 = vpop.permute.xlu0 %135
    %139 = vset.pattern.permute.xlu0 0
    %140 = vperm.xlu0 %139, %v111
    %v141 = vpop.permute.xlu0 %140
    %144 = vset.pattern.permute.xlu0 0
    %145 = vperm.xlu0 %144, %v112
    %v146 = vpop.permute.xlu0 %145
    %v148 = vmul.f32 %v127, %v131
    %v149 = vmul.f32 %v126, %v136
    %v150 = vmul.f32 %v125, %v141
    %v151 = vmul.f32 %v124, %v146
    %v152 = vpack.c.bf16 %v149, %v148
    %v153 = vpack.c.bf16 %v151, %v150
    %v154 = vrot.slane %v53, 1
    %v155 = vrot.slane %v54, 1
    %v156 = vrot.slane %v55, 1
    %v157 = vrot.slane %v56, 1
    %vm158 = vcmp.lt.s32.totalorder %v122, 7
    %v159 = vsel %vm158, %v156, %v157
    %v160 = vsel %vm158, %v155, %v156
    %v161 = vsel %vm158, %v154, %v155
    %v162 = vsel %vm158, %v157, %v154
    %164 = vset.pattern.permute.xlu0 0
    %165 = vperm.xlu0 %164, %v113
    %v166 = vpop.permute.xlu0 %165
    %169 = vset.pattern.permute.xlu0 0
    %170 = vperm.xlu0 %169, %v114
    %v171 = vpop.permute.xlu0 %170
    %174 = vset.pattern.permute.xlu0 0
    %175 = vperm.xlu0 %174, %v115
    %v176 = vpop.permute.xlu0 %175
    %179 = vset.pattern.permute.xlu0 0
    %180 = vperm.xlu0 %179, %v116
    %v181 = vpop.permute.xlu0 %180
    %v183 = vmul.f32 %v161, %v166
    %v184 = vmul.f32 %v160, %v171
    %v185 = vmul.f32 %v159, %v176
    %v186 = vmul.f32 %v162, %v181
    %v187 = vpack.c.bf16 %v184, %v183
    %v188 = vpack.c.bf16 %v186, %v185
    %v189 = vpack.c.bf16 %v54, %v53
    %v190 = vpack.c.bf16 %v56, %v55
    %v207 = vunpack.c.l.b16 %v74
    %v208 = vunpack.c.l.b16 %v75
    %v209 = vunpack.c.l.b16 %v76
    %v210 = vunpack.c.l.b16 %v77
    %v211 = vunpack.c.l.b16 %v78
    %v212 = vunpack.c.l.b16 %v79
    %v213 = vunpack.c.l.b16 %v80
    %v214 = vunpack.c.l.b16 %v81
    %v215 = vunpack.c.l.b16 %v82
    %v216 = vunpack.c.l.b16 %v83
    %v217 = vunpack.c.l.b16 %v84
    %v218 = vunpack.c.l.b16 %v85
    %v219 = vunpack.c.l.b16 %v86
    %v220 = vunpack.c.l.b16 %v87
    %v221 = vunpack.c.l.b16 %v88
    %v222 = vunpack.c.l.b16 %v89
    %v223 = vpack.c.b16 %v208, %v207
    %v224 = vpack.c.b16 %v210, %v209
    %v225 = vpack.c.b16 %v212, %v211
    %v226 = vpack.c.b16 %v214, %v213
    %v227 = vpack.c.b16 %v216, %v215
    %v228 = vpack.c.b16 %v218, %v217
    %v229 = vpack.c.b16 %v220, %v219
    %v230 = vpack.c.b16 %v222, %v221
    %239 = vmatprep.subr.bf16.mxu0 0
    %240 = vmatpush1.bf16.msra.mxu0 %v223
    %241 = vmatprep.subr.bf16.mxu0 0
    %242 = vmatpush1.bf16.msra.mxu0 %v224
    %243 = vmatprep.subr.bf16.mxu0 0
    %244 = vmatpush1.bf16.msra.mxu0 %v225
    %245 = vmatprep.subr.bf16.mxu0 0
    %246 = vmatpush1.bf16.msra.mxu0 %v226
    %247 = vmatprep.subr.bf16.mxu0 0
    %248 = vmatpush1.bf16.msra.mxu0 %v227
    %249 = vmatprep.subr.bf16.mxu0 0
    %250 = vmatpush1.bf16.msra.mxu0 %v228
    %251 = vmatprep.subr.bf16.mxu0 0
    %252 = vmatpush1.bf16.msra.mxu0 %v229
    %253 = vmatprep.subr.bf16.mxu0 0
    %254 = vmatpush1.bf16.msra.mxu0 %v230
    %255 = vmatprep.subr.bf16.mxu0 0
    %256 = vmatpush1.bf16.msra.mxu0 0
    %257 = vmatprep.subr.bf16.mxu0 0
    %258 = vmatpush1.bf16.msra.mxu0 0
    %259 = vmatprep.subr.bf16.mxu0 0
    %260 = vmatpush1.bf16.msra.mxu0 0
    %261 = vmatprep.subr.bf16.mxu0 0
    %262 = vmatpush1.bf16.msra.mxu0 0
    %263 = vmatprep.subr.bf16.mxu0 0
    %264 = vmatpush1.bf16.msra.mxu0 0
    %265 = vmatprep.subr.bf16.mxu0 0
    %266 = vmatpush1.bf16.msra.mxu0 0
    %267 = vmatprep.subr.bf16.mxu0 0
    %268 = vmatpush1.bf16.msra.mxu0 0
    %269 = vmatprep.subr.bf16.mxu0 0
    %270 = vmatpush1.bf16.msra.mxu0 0
    %271 = vmatprep.mubr.bf16.mxu0 0
    %272 = vmatmul.mubr.bf16.gmra.mrb[0].mxu0 %v189
    %v273 = vpop.f32.mrb[0].mxu0
    %v274 = vadd.f32 0.0, %v273
    %v275 = vpop.f32.mrb[0].mxu0
    %v276 = vpop.f32.mrb[0].mxu0
    %v277 = vadd.f32 0.0, %v276
    %v278 = vpop.f32.mrb[0].mxu0
    %279 = vmatprep.mubr.bf16.mxu0 0
    %280 = vmatmul.mubr.bf16.gmra.mrb[0].mxu0 %v190
    %v281 = vpop.f32.mrb[0].mxu0
    %v282 = vadd.f32 0.0, %v281
    %v283 = vpop.f32.mrb[0].mxu0
    %v284 = vpop.f32.mrb[0].mxu0
    %v285 = vadd.f32 0.0, %v284
    %v286 = vpop.f32.mrb[0].mxu0
    %287 = vdwg.mxu0
    %v304 = vunpack.c.l.b16 %v57
    %v305 = vunpack.c.l.b16 %v58
    %v306 = vunpack.c.l.b16 %v59
    %v307 = vunpack.c.l.b16 %v60
    %v308 = vunpack.c.l.b16 %v61
    %v309 = vunpack.c.l.b16 %v62
    %v310 = vunpack.c.l.b16 %v63
    %v311 = vunpack.c.l.b16 %v64
    %v312 = vunpack.c.l.b16 %v65
    %v313 = vunpack.c.l.b16 %v66
    %v314 = vunpack.c.l.b16 %v67
    %v315 = vunpack.c.l.b16 %v68
    %v316 = vunpack.c.l.b16 %v69
    %v317 = vunpack.c.l.b16 %v70
    %v318 = vunpack.c.l.b16 %v71
    %v319 = vunpack.c.l.b16 %v72
    %v320 = vpack.c.b16 %v305, %v304
    %v321 = vpack.c.b16 %v307, %v306
    %v322 = vpack.c.b16 %v309, %v308
    %v323 = vpack.c.b16 %v311, %v310
    %v324 = vpack.c.b16 %v313, %v312
    %v325 = vpack.c.b16 %v315, %v314
    %v326 = vpack.c.b16 %v317, %v316
    %v327 = vpack.c.b16 %v319, %v318
    %336 = vmatprep.subr.bf16.mxu0 0
    %337 = vmatpush1.bf16.msra.mxu0 %v320
    %338 = vmatprep.subr.bf16.mxu0 0
    %339 = vmatpush1.bf16.msra.mxu0 %v321
    %340 = vmatprep.subr.bf16.mxu0 0
    %341 = vmatpush1.bf16.msra.mxu0 %v322
    %342 = vmatprep.subr.bf16.mxu0 0
    %343 = vmatpush1.bf16.msra.mxu0 %v323
    %344 = vmatprep.subr.bf16.mxu0 0
    %345 = vmatpush1.bf16.msra.mxu0 %v324
    %346 = vmatprep.subr.bf16.mxu0 0
    %347 = vmatpush1.bf16.msra.mxu0 %v325
    %348 = vmatprep.subr.bf16.mxu0 0
    %349 = vmatpush1.bf16.msra.mxu0 %v326
    %350 = vmatprep.subr.bf16.mxu0 0
    %351 = vmatpush1.bf16.msra.mxu0 %v327
    %352 = vmatprep.subr.bf16.mxu0 0
    %353 = vmatpush1.bf16.msra.mxu0 0
    %354 = vmatprep.subr.bf16.mxu0 0
    %355 = vmatpush1.bf16.msra.mxu0 0
    %356 = vmatprep.subr.bf16.mxu0 0
    %357 = vmatpush1.bf16.msra.mxu0 0
    %358 = vmatprep.subr.bf16.mxu0 0
    %359 = vmatpush1.bf16.msra.mxu0 0
    %360 = vmatprep.subr.bf16.mxu0 0
    %361 = vmatpush1.bf16.msra.mxu0 0
    %362 = vmatprep.subr.bf16.mxu0 0
    %363 = vmatpush1.bf16.msra.mxu0 0
    %364 = vmatprep.subr.bf16.mxu0 0
    %365 = vmatpush1.bf16.msra.mxu0 0
    %366 = vmatprep.subr.bf16.mxu0 0
    %367 = vmatpush1.bf16.msra.mxu0 0
    %368 = vmatprep.mubr.bf16.mxu0 0
    %369 = vmatmul.mubr.bf16.gmra.mrb[0].mxu0 %v152
    %v370 = vpop.f32.mrb[0].mxu0
    %v371 = vadd.f32 %v274, %v370
    %v372 = vpop.f32.mrb[0].mxu0
    %v373 = vpop.f32.mrb[0].mxu0
    %v374 = vadd.f32 %v277, %v373
    %v375 = vpop.f32.mrb[0].mxu0
    %376 = vmatprep.mubr.bf16.mxu0 0
    %377 = vmatmul.mubr.bf16.gmra.mrb[0].mxu0 %v153
    %v378 = vpop.f32.mrb[0].mxu0
    %v379 = vadd.f32 %v282, %v378
    %v380 = vpop.f32.mrb[0].mxu0
    %v381 = vpop.f32.mrb[0].mxu0
    %v382 = vadd.f32 %v285, %v381
    %v383 = vpop.f32.mrb[0].mxu0
    %384 = vdwg.mxu0
    %v401 = vunpack.c.l.b16 %v91
    %v402 = vunpack.c.l.b16 %v92
    %v403 = vunpack.c.l.b16 %v93
    %v404 = vunpack.c.l.b16 %v94
    %v405 = vunpack.c.l.b16 %v95
    %v406 = vunpack.c.l.b16 %v96
    %v407 = vunpack.c.l.b16 %v97
    %v408 = vunpack.c.l.b16 %v98
    %v409 = vunpack.c.l.b16 %v99
    %v410 = vunpack.c.l.b16 %v100
    %v411 = vunpack.c.l.b16 %v101
    %v412 = vunpack.c.l.b16 %v102
    %v413 = vunpack.c.l.b16 %v103
    %v414 = vunpack.c.l.b16 %v104
    %v415 = vunpack.c.l.b16 %v105
    %v416 = vunpack.c.l.b16 %v106
    %v417 = vpack.c.b16 %v402, %v401
    %v418 = vpack.c.b16 %v404, %v403
    %v419 = vpack.c.b16 %v406, %v405
    %v420 = vpack.c.b16 %v408, %v407
    %v421 = vpack.c.b16 %v410, %v409
    %v422 = vpack.c.b16 %v412, %v411
    %v423 = vpack.c.b16 %v414, %v413
    %v424 = vpack.c.b16 %v416, %v415
    %433 = vmatprep.subr.bf16.mxu0 0
    %434 = vmatpush1.bf16.msra.mxu0 %v417
    %435 = vmatprep.subr.bf16.mxu0 0
    %436 = vmatpush1.bf16.msra.mxu0 %v418
    %437 = vmatprep.subr.bf16.mxu0 0
    %438 = vmatpush1.bf16.msra.mxu0 %v419
    %439 = vmatprep.subr.bf16.mxu0 0
    %440 = vmatpush1.bf16.msra.mxu0 %v420
    %441 = vmatprep.subr.bf16.mxu0 0
    %442 = vmatpush1.bf16.msra.mxu0 %v421
    %443 = vmatprep.subr.bf16.mxu0 0
    %444 = vmatpush1.bf16.msra.mxu0 %v422
    %445 = vmatprep.subr.bf16.mxu0 0
    %446 = vmatpush1.bf16.msra.mxu0 %v423
    %447 = vmatprep.subr.bf16.mxu0 0
    %448 = vmatpush1.bf16.msra.mxu0 %v424
    %449 = vmatprep.subr.bf16.mxu0 0
    %450 = vmatpush1.bf16.msra.mxu0 0
    %451 = vmatprep.subr.bf16.mxu0 0
    %452 = vmatpush1.bf16.msra.mxu0 0
    %453 = vmatprep.subr.bf16.mxu0 0
    %454 = vmatpush1.bf16.msra.mxu0 0
    %455 = vmatprep.subr.bf16.mxu0 0
    %456 = vmatpush1.bf16.msra.mxu0 0
    %457 = vmatprep.subr.bf16.mxu0 0
    %458 = vmatpush1.bf16.msra.mxu0 0
    %459 = vmatprep.subr.bf16.mxu0 0
    %460 = vmatpush1.bf16.msra.mxu0 0
    %461 = vmatprep.subr.bf16.mxu0 0
    %462 = vmatpush1.bf16.msra.mxu0 0
    %463 = vmatprep.subr.bf16.mxu0 0
    %464 = vmatpush1.bf16.msra.mxu0 0
    %465 = vmatprep.mubr.bf16.mxu0 0
    %466 = vmatmul.mubr.bf16.gmra.mrb[0].mxu0 %v187
    %v467 = vpop.f32.mrb[0].mxu0
    %v468 = vadd.f32 0.0, %v467
    %v469 = vpop.f32.mrb[0].mxu0
    %v470 = vpop.f32.mrb[0].mxu0
    %v471 = vadd.f32 0.0, %v470
    %v472 = vpop.f32.mrb[0].mxu0
    %473 = vmatprep.mubr.bf16.mxu0 0
    %474 = vmatmul.mubr.bf16.gmra.mrb[0].mxu0 %v188
    %v475 = vpop.f32.mrb[0].mxu0
    %v476 = vadd.f32 0.0, %v475
    %v477 = vpop.f32.mrb[0].mxu0
    %v478 = vpop.f32.mrb[0].mxu0
    %v479 = vadd.f32 0.0, %v478
    %v480 = vpop.f32.mrb[0].mxu0
    %481 = vdwg.mxu0
    %v482 = vadd.f32 %v371, %v468
    %v483 = vadd.f32 %v374, %v471
    %v484 = vadd.f32 %v379, %v476
    %v485 = vadd.f32 %v382, %v479
    %v487 = vlaneseq
    %v488 = vshrl.u32 %v487, 7
    %v489 = vsub.s32 0, %v488
    %v490 = vrot.slane %v107, %v489
    %v492 = vmul.f32 %v482, %v490
    %v493 = vmul.f32 %v483, %v490
    %v494 = vmul.f32 %v484, %v490
    %v495 = vmul.f32 %v485, %v490
    %v497 = vlaneseq
    %v498 = vshrl.u32 %v497, 7
    %v499 = vsub.s32 0, %v498
    %v500 = vrot.slane %v108, %v499
    %v502 = vadd.f32 %v492, %v500
    %v503 = vadd.f32 %v493, %v500
    %v504 = vadd.f32 %v494, %v500
    %v505 = vadd.f32 %v495, %v500
    %v506 = vmul.f32 %v502, 0.01
    %v507 = vmul.f32 %v503, 0.01
    %v508 = vmul.f32 %v504, 0.01
    %v509 = vmul.f32 %v505, 0.01
    %v510 = vmax.f32 %v502, %v506
    %v511 = vmax.f32 %v503, %v507
    %v512 = vmax.f32 %v504, %v508
    %v513 = vmax.f32 %v505, %v509
    %v514 = vrot.slane %v510, 7
    %v515 = vrot.slane %v511, 7
    %v516 = vrot.slane %v512, 7
    %v517 = vrot.slane %v513, 7
    %v518 = vsel %vm123, %v516, %v517
    %v519 = vsel %vm123, %v515, %v516
    %v520 = vsel %vm123, %v514, %v515
    %v521 = vsel %vm123, %v517, %v514
    %v522 = vmul.f32 %v521, %v131
    %v523 = vmul.f32 %v520, %v136
    %v524 = vmul.f32 %v519, %v141
    %v525 = vmul.f32 %v518, %v146
    %v526 = vpack.c.bf16 %v523, %v522
    %v527 = vpack.c.bf16 %v525, %v524
    %v528 = vrot.slane %v510, 1
    %v529 = vrot.slane %v511, 1
    %v530 = vrot.slane %v512, 1
    %v531 = vrot.slane %v513, 1
    %v532 = vsel %vm158, %v530, %v531
    %v533 = vsel %vm158, %v529, %v530
    %v534 = vsel %vm158, %v528, %v529
    %v535 = vsel %vm158, %v531, %v528
    %v536 = vmul.f32 %v534, %v166
    %v537 = vmul.f32 %v533, %v171
    %v538 = vmul.f32 %v532, %v176
    %v539 = vmul.f32 %v535, %v181
    %v540 = vpack.c.bf16 %v537, %v536
    %v541 = vpack.c.bf16 %v539, %v538
    %v542 = vpack.c.bf16 %v511, %v510
    %v543 = vpack.c.bf16 %v513, %v512
    %544 = vmatprep.subr.bf16.mxu0 0
    %545 = vmatpush1.bf16.msra.mxu0 %v223
    %546 = vmatprep.subr.bf16.mxu0 0
    %547 = vmatpush1.bf16.msra.mxu0 %v224
    %548 = vmatprep.subr.bf16.mxu0 0
    %549 = vmatpush1.bf16.msra.mxu0 %v225
    %550 = vmatprep.subr.bf16.mxu0 0
    %551 = vmatpush1.bf16.msra.mxu0 %v226
    %552 = vmatprep.subr.bf16.mxu0 0
    %553 = vmatpush1.bf16.msra.mxu0 %v227
    %554 = vmatprep.subr.bf16.mxu0 0
    %555 = vmatpush1.bf16.msra.mxu0 %v228
    %556 = vmatprep.subr.bf16.mxu0 0
    %557 = vmatpush1.bf16.msra.mxu0 %v229
    %558 = vmatprep.subr.bf16.mxu0 0
    %559 = vmatpush1.bf16.msra.mxu0 %v230
    %560 = vmatprep.subr.bf16.mxu0 0
    %561 = vmatpush1.bf16.msra.mxu0 0
    %562 = vmatprep.subr.bf16.mxu0 0
    %563 = vmatpush1.bf16.msra.mxu0 0
    %564 = vmatprep.subr.bf16.mxu0 0
    %565 = vmatpush1.bf16.msra.mxu0 0
    %566 = vmatprep.subr.bf16.mxu0 0
    %567 = vmatpush1.bf16.msra.mxu0 0
    %568 = vmatprep.subr.bf16.mxu0 0
    %569 = vmatpush1.bf16.msra.mxu0 0
    %570 = vmatprep.subr.bf16.mxu0 0
    %571 = vmatpush1.bf16.msra.mxu0 0
    %572 = vmatprep.subr.bf16.mxu0 0
    %573 = vmatpush1.bf16.msra.mxu0 0
    %574 = vmatprep.subr.bf16.mxu0 0
    %575 = vmatpush1.bf16.msra.mxu0 0
    %576 = vmatprep.mubr.bf16.mxu0 0
    %577 = vmatmul.mubr.bf16.gmra.mrb[0].mxu0 %v542
    %v578 = vpop.f32.mrb[0].mxu0
    %v579 = vadd.f32 0.0, %v578
    %v580 = vpop.f32.mrb[0].mxu0
    %v581 = vpop.f32.mrb[0].mxu0
    %v582 = vadd.f32 0.0, %v581
    %v583 = vpop.f32.mrb[0].mxu0
    %584 = vmatprep.mubr.bf16.mxu0 0
    %585 = vmatmul.mubr.bf16.gmra.mrb[0].mxu0 %v543
    %v586 = vpop.f32.mrb[0].mxu0
    %v587 = vadd.f32 0.0, %v586
    %v588 = vpop.f32.mrb[0].mxu0
    %v589 = vpop.f32.mrb[0].mxu0
    %v590 = vadd.f32 0.0, %v589
    %v591 = vpop.f32.mrb[0].mxu0
    %592 = vdwg.mxu0
    %593 = vmatprep.subr.bf16.mxu0 0
    %594 = vmatpush1.bf16.msra.mxu0 %v320
    %595 = vmatprep.subr.bf16.mxu0 0
    %596 = vmatpush1.bf16.msra.mxu0 %v321
    %597 = vmatprep.subr.bf16.mxu0 0
    %598 = vmatpush1.bf16.msra.mxu0 %v322
    %599 = vmatprep.subr.bf16.mxu0 0
    %600 = vmatpush1.bf16.msra.mxu0 %v323
    %601 = vmatprep.subr.bf16.mxu0 0
    %602 = vmatpush1.bf16.msra.mxu0 %v324
    %603 = vmatprep.subr.bf16.mxu0 0
    %604 = vmatpush1.bf16.msra.mxu0 %v325
    %605 = vmatprep.subr.bf16.mxu0 0
    %606 = vmatpush1.bf16.msra.mxu0 %v326
    %607 = vmatprep.subr.bf16.mxu0 0
    %608 = vmatpush1.bf16.msra.mxu0 %v327
    %609 = vmatprep.subr.bf16.mxu0 0
    %610 = vmatpush1.bf16.msra.mxu0 0
    %611 = vmatprep.subr.bf16.mxu0 0
    %612 = vmatpush1.bf16.msra.mxu0 0
    %613 = vmatprep.subr.bf16.mxu0 0
    %614 = vmatpush1.bf16.msra.mxu0 0
    %615 = vmatprep.subr.bf16.mxu0 0
    %616 = vmatpush1.bf16.msra.mxu0 0
    %617 = vmatprep.subr.bf16.mxu0 0
    %618 = vmatpush1.bf16.msra.mxu0 0
    %619 = vmatprep.subr.bf16.mxu0 0
    %620 = vmatpush1.bf16.msra.mxu0 0
    %621 = vmatprep.subr.bf16.mxu0 0
    %622 = vmatpush1.bf16.msra.mxu0 0
    %623 = vmatprep.subr.bf16.mxu0 0
    %624 = vmatpush1.bf16.msra.mxu0 0
    %625 = vmatprep.mubr.bf16.mxu0 0
    %626 = vmatmul.mubr.bf16.gmra.mrb[0].mxu0 %v526
    %v627 = vpop.f32.mrb[0].mxu0
    %v628 = vadd.f32 %v579, %v627
    %v629 = vpop.f32.mrb[0].mxu0
    %v630 = vpop.f32.mrb[0].mxu0
    %v631 = vadd.f32 %v582, %v630
    %v632 = vpop.f32.mrb[0].mxu0
    %633 = vmatprep.mubr.bf16.mxu0 0
    %634 = vmatmul.mubr.bf16.gmra.mrb[0].mxu0 %v527
    %v635 = vpop.f32.mrb[0].mxu0
    %v636 = vadd.f32 %v587, %v635
    %v637 = vpop.f32.mrb[0].mxu0
    %v638 = vpop.f32.mrb[0].mxu0
    %v639 = vadd.f32 %v590, %v638
    %v640 = vpop.f32.mrb[0].mxu0
    %641 = vdwg.mxu0
    %642 = vmatprep.subr.bf16.mxu0 0
    %643 = vmatpush1.bf16.msra.mxu0 %v417
    %644 = vmatprep.subr.bf16.mxu0 0
    %645 = vmatpush1.bf16.msra.mxu0 %v418
    %646 = vmatprep.subr.bf16.mxu0 0
    %647 = vmatpush1.bf16.msra.mxu0 %v419
    %648 = vmatprep.subr.bf16.mxu0 0
    %649 = vmatpush1.bf16.msra.mxu0 %v420
    %650 = vmatprep.subr.bf16.mxu0 0
    %651 = vmatpush1.bf16.msra.mxu0 %v421
    %652 = vmatprep.subr.bf16.mxu0 0
    %653 = vmatpush1.bf16.msra.mxu0 %v422
    %654 = vmatprep.subr.bf16.mxu0 0
    %655 = vmatpush1.bf16.msra.mxu0 %v423
    %656 = vmatprep.subr.bf16.mxu0 0
    %657 = vmatpush1.bf16.msra.mxu0 %v424
    %658 = vmatprep.subr.bf16.mxu0 0
    %659 = vmatpush1.bf16.msra.mxu0 0
    %660 = vmatprep.subr.bf16.mxu0 0
    %661 = vmatpush1.bf16.msra.mxu0 0
    %662 = vmatprep.subr.bf16.mxu0 0
    %663 = vmatpush1.bf16.msra.mxu0 0
    %664 = vmatprep.subr.bf16.mxu0 0
    %665 = vmatpush1.bf16.msra.mxu0 0
    %666 = vmatprep.subr.bf16.mxu0 0
    %667 = vmatpush1.bf16.msra.mxu0 0
    %668 = vmatprep.subr.bf16.mxu0 0
    %669 = vmatpush1.bf16.msra.mxu0 0
    %670 = vmatprep.subr.bf16.mxu0 0
    %671 = vmatpush1.bf16.msra.mxu0 0
    %672 = vmatprep.subr.bf16.mxu0 0
    %673 = vmatpush1.bf16.msra.mxu0 0
    %674 = vmatprep.mubr.bf16.mxu0 0
    %675 = vmatmul.mubr.bf16.gmra.mrb[0].mxu0 %v540
    %v676 = vpop.f32.mrb[0].mxu0
    %v677 = vadd.f32 0.0, %v676
    %v678 = vpop.f32.mrb[0].mxu0
    %v679 = vpop.f32.mrb[0].mxu0
    %v680 = vadd.f32 0.0, %v679
    %v681 = vpop.f32.mrb[0].mxu0
    %682 = vmatprep.mubr.bf16.mxu0 0
    %683 = vmatmul.mubr.bf16.gmra.mrb[0].mxu0 %v541
    %v684 = vpop.f32.mrb[0].mxu0
    %v685 = vadd.f32 0.0, %v684
    %v686 = vpop.f32.mrb[0].mxu0
    %v687 = vpop.f32.mrb[0].mxu0
    %v688 = vadd.f32 0.0, %v687
    %v689 = vpop.f32.mrb[0].mxu0
    %690 = vdwg.mxu0
    %v691 = vadd.f32 %v628, %v677
    %v692 = vadd.f32 %v631, %v680
    %v693 = vadd.f32 %v636, %v685
    %v694 = vadd.f32 %v639, %v688
    %v695 = vmul.f32 %v691, %v490
    %v696 = vmul.f32 %v692, %v490
    %v697 = vmul.f32 %v693, %v490
    %v698 = vmul.f32 %v694, %v490
    %v699 = vadd.f32 %v695, %v500
    %v700 = vadd.f32 %v696, %v500
    %v701 = vadd.f32 %v697, %v500
    %v702 = vadd.f32 %v698, %v500
    %v703 = vmul.f32 %v699, 0.01
    %v704 = vmul.f32 %v700, 0.01
    %v705 = vmul.f32 %v701, 0.01
    %v706 = vmul.f32 %v702, 0.01
    %v707 = vmax.f32 %v699, %v703
    %v708 = vmax.f32 %v700, %v704
    %v709 = vmax.f32 %v701, %v705
    %v710 = vmax.f32 %v702, %v706
    %v711 = vadd.f32 %v53, %v707
    %v712 = vadd.f32 %v54, %v708
    %v713 = vadd.f32 %v55, %v709
    %v714 = vadd.f32 %v56, %v710
    %715 = vst [vmem:[#allocation7] sm:$0xff] %v711
    %716 = vst [vmem:[#allocation7 + $0x8] sm:$0xff] %v712
    %717 = vst [vmem:[#allocation7 + $0x10] sm:$0xff] %v713
    %718 = vst [vmem:[#allocation7 + $0x18] sm:$0xff] %v714
    // Predicated region
    $region34: #{tpu_custom_call.1} parent=1 // pred_check
      _
    $region35: #{tpu_custom_call.1} parent=1 // pred_check_branch
      %720 = sbr.rel (0) target = $region37
    $region36: #{tpu_custom_call.1} parent=1 // pred_region
      %s722 = ssub.s32 512, 512
      %723 = vsyncadd [#allocation4], %s722
      %s724 = sshll.u32 [#allocation7], 4
      %s725 = int_to_ptr.vmem [resolvable:$true] %s724
      %730 = dma.vmem_to_hbm [thread:$0]  %s725, 512, %s6, [#allocation4], 128, 128, 8
    $region37: #{tpu_custom_call.1} parent=1 // pred_fallthru
      _
    // Predicated region
    $region38: #{tpu_custom_call.1} parent=1 // pred_check
      _
    $region39: #{tpu_custom_call.1} parent=1 // pred_check_branch
      %732 = sbr.rel (0) target = $region41
    $region40: #{tpu_custom_call.1} parent=1 // pred_region
      %733 = dma.done [#allocation4], 512
    $region41: #{tpu_custom_call.1} parent=1 // pred_fallthru
      _
    %734 = vsyncpa [#allocation3], 1
    %735 = vsyncpa [#allocation6], 1
    %736 = vsyncpa [#allocation4], 1

</llo_original>
